<compile_context>
chip_gen: v5e
topology: v5e:2x2
jax: 0.10.0
libtpu: 0.0.40
codegen_flags: <defaults>
</compile_context>

<pallas_src>
import functools

import jax
import jax.numpy as jnp
from jax.experimental import pallas as pl
from jax.experimental.pallas import tpu as pltpu


NODE_ALIGN = 16     # node-dim pad granularity (bf16 sublane pack)
FEAT_PAD = 128      # feature / lane width for all weight matmuls
GRAPH_PAD = 8       # padded graph count (f32 sublane multiple)
BIAS_ROWS = 8       # rows 0..2 = conv biases, 3 = lin1 bias, 4 = lin2 bias
OUT_PAD = 128       # lane-dense output tile width


def _round_up(n, m):
    return ((n + m - 1) // m) * m


# ----------------------------- fused Pallas kernel ---------------------------

def fused_gcn_kernel(a_ref, x_ref, p_ref, cw_ref, lw_ref, b_ref, o_ref):
    """One graph batch per grid step; all weights VMEM-resident.

      h = relu(A_hat @ (h @ W_i) + b_i)   i = 1..3   (dropout = id, inference)
      pooled = P @ h                       (global mean pool as a matmul)
      z = relu(pooled @ LW1 + lb1); out = z @ LW2 + lb2
    """
    a = a_ref[...]                      # (n_pad, n_pad)  f32
    h = x_ref[...]                      # (n_pad, 128)    bf16
    b = b_ref[...]                      # (8, 128)        f32

    def conv(h_in, w, brow):
        # X @ W on the bf16 MXU path (f32 accumulate), then f32 aggregation.
        xw = jnp.dot(h_in, w, preferred_element_type=jnp.float32)
        agg = jnp.dot(a, xw, preferred_element_type=jnp.float32)
        return jnp.maximum(agg + brow, 0.0).astype(jnp.bfloat16)

    h = conv(h, cw_ref[0], b[0:1, :])   # relu(conv1)
    h = conv(h, cw_ref[1], b[1:2, :])   # relu(conv2)
    h = conv(h, cw_ref[2], b[2:3, :])   # relu(conv3)

    # global_mean_pool as a (GRAPH_PAD, n_pad) @ (n_pad, 128) matmul, f32
    pooled = jnp.dot(p_ref[...], h.astype(jnp.float32),
                     preferred_element_type=jnp.float32)

    # lin1 + relu, lin2 — epilogue on the pooled tile, still in VMEM
    z = jnp.dot(pooled.astype(jnp.bfloat16), lw_ref[0],
                preferred_element_type=jnp.float32) + b[3:4, :]
    z = jnp.maximum(z, 0.0)
    out = jnp.dot(z.astype(jnp.bfloat16), lw_ref[1],
                  preferred_element_type=jnp.float32) + b[4:5, :]

    o_ref[...] = out.astype(o_ref.dtype)     # (8, 128) f32, lane-dense store


# ------------------------------ packing / padding -----------------------------

def _pad2(arr, rows, cols, dtype):
    out = jnp.zeros((rows, cols), dtype)
    return out.at[:arr.shape[0], :arr.shape[1]].set(arr.astype(dtype))


def _pad3(arr, rows, cols, dtype):
    out = jnp.zeros((arr.shape[0], rows, cols), dtype)
    return out.at[:, :arr.shape[1], :arr.shape[2]].set(arr.astype(dtype))


def pack_params(params):
    """Pack the 10 weight/bias tensors into 3 padded operands."""
    conv_w = jnp.stack([_pad2(params[f"w{i}"], FEAT_PAD, FEAT_PAD, jnp.bfloat16)
                        for i in (1, 2, 3)])                          # (3,128,128)
    lin_w = jnp.stack([_pad2(params["lw1"], FEAT_PAD, FEAT_PAD, jnp.bfloat16),
                       _pad2(params["lw2"], FEAT_PAD, FEAT_PAD, jnp.bfloat16)])  # (2,128,128)
    bias = jnp.zeros((BIAS_ROWS, FEAT_PAD), jnp.float32)
    for row, name in enumerate(("b1", "b2", "b3", "lb1", "lb2")):
        v = params[name].reshape(-1).astype(jnp.float32)
        bias = bias.at[row, :v.shape[0]].set(v)
    return conv_w, lin_w, bias


# ------------------------------ pallas_call wrapper ---------------------------

@jax.jit
def _gcn_fused_padded(a_hat_b, x_b, pool_b, params):
    """Batched fused forward. Returns padded (B, GRAPH_PAD, OUT_PAD) f32."""
    B, N, _ = a_hat_b.shape
    n_pad = _round_up(N, NODE_ALIGN)

    a_p = _pad3(a_hat_b, n_pad, n_pad, jnp.float32)          # f32 (accuracy)
    x_p = _pad3(x_b, n_pad, FEAT_PAD, jnp.bfloat16)
    p_p = _pad3(pool_b, GRAPH_PAD, n_pad, jnp.float32)        # f32 (accuracy)
    conv_w, lin_w, bias = pack_params(params)

    flops = 2 * B * (3 * n_pad * FEAT_PAD * FEAT_PAD          # h @ W
                     + 3 * n_pad * n_pad * FEAT_PAD           # A_hat @ (XW)
                     + GRAPH_PAD * n_pad * FEAT_PAD           # pool
                     + 2 * GRAPH_PAD * FEAT_PAD * FEAT_PAD)   # lin1, lin2
    bytes_accessed = (a_p.size * 4 + x_p.size * 2 + p_p.size * 4
                      + conv_w.size * 2 + lin_w.size * 2 + bias.size * 4
                      + B * GRAPH_PAD * OUT_PAD * 4)

    return pl.pallas_call(
        fused_gcn_kernel,
        out_shape=jax.ShapeDtypeStruct((B, GRAPH_PAD, OUT_PAD), jnp.float32),
        grid=(B,),
        in_specs=[
            # per-batch operands (pipelined across grid steps)
            pl.BlockSpec((None, n_pad, n_pad), lambda i: (i, 0, 0)),      # A_hat
            pl.BlockSpec((None, n_pad, FEAT_PAD), lambda i: (i, 0, 0)),   # X
            pl.BlockSpec((None, GRAPH_PAD, n_pad), lambda i: (i, 0, 0)),  # pool
            # weights / biases: constant index_map -> stay VMEM-resident
            pl.BlockSpec((3, FEAT_PAD, FEAT_PAD), lambda i: (0, 0, 0)),   # conv W
            pl.BlockSpec((2, FEAT_PAD, FEAT_PAD), lambda i: (0, 0, 0)),   # lin W
            pl.BlockSpec((BIAS_ROWS, FEAT_PAD), lambda i: (0, 0)),        # biases
        ],
        out_specs=pl.BlockSpec((None, GRAPH_PAD, OUT_PAD), lambda i: (i, 0, 0)),
        compiler_params=pltpu.CompilerParams(
            dimension_semantics=("parallel",)),   # shards batches across TCs (v7x)
        cost_estimate=pl.CostEstimate(flops=flops, transcendentals=0,
                                      bytes_accessed=bytes_accessed),
    )(a_p, x_p, p_p, conv_w, lin_w, bias)


def gcn_forward_batched(params, a_hat_b, x_b, pool_b, num_graphs, num_classes):
    out = _gcn_fused_padded(a_hat_b, x_b, pool_b, params)
    return out[:, :num_graphs, :num_classes]


# ------------------------------- JAX glue -------------------------------------

def build_normalized_adjacency(edge_index, edge_attr, num_nodes):
    """PyG GCNConv gcn_norm: A_hat = D^-1/2 (A + I) D^-1/2.

    Densification via one-hot matmuls (no XLA scatter):
        A[d, s] = sum_e edge_attr[e] * [dst_e == d] * [src_e == s]
    """
    src, dst = edge_index[0], edge_index[1]
    node_ids = jnp.arange(num_nodes, dtype=edge_index.dtype)
    onehot_dst = (node_ids[:, None] == dst[None, :]).astype(jnp.float32)   # (N, E)
    onehot_src = (node_ids[:, None] == src[None, :]).astype(jnp.float32)   # (N, E)
    a = jnp.dot(onehot_dst * edge_attr[None, :].astype(jnp.float32), onehot_src.T)
    a = a + jnp.eye(num_nodes, dtype=jnp.float32)             # self loops (weight 1)
    deg = a.sum(axis=1)
    d_inv_sqrt = jnp.where(deg > 0, jax.lax.rsqrt(deg), 0.0)
    return d_inv_sqrt[:, None] * a * d_inv_sqrt[None, :]


def build_mean_pool_matrix(batch, num_graphs):
    # P[g, i] = 1/|graph g| if node i belongs to graph g else 0
    onehot = (batch[None, :] == jnp.arange(num_graphs)[:, None]).astype(jnp.float32)
    counts = onehot.sum(axis=1, keepdims=True)
    return onehot / jnp.maximum(counts, 1.0)


@functools.partial(jax.jit, static_argnames=("num_graphs", "num_classes"))
def gcn_forward(params, x, edge_index, edge_attr, batch, num_graphs, num_classes):
    a_hat = build_normalized_adjacency(edge_index, edge_attr, x.shape[0])
    pool_mat = build_mean_pool_matrix(batch, num_graphs)
    out = _gcn_fused_padded(a_hat[None], x[None], pool_mat[None], params)
    return out[0, :num_graphs, :num_classes]


def init_params(key, num_features, num_classes):
    dims = [(num_features, 64), (64, 128), (128, 128)]       # GCNConv layers
    lin_dims = [(128, 64), (64, num_classes)]                 # Linear layers
    keys = jax.random.split(key, 10)
    params = {}
    for i, (fin, fout) in enumerate(dims, start=1):
        scale = (2.0 / (fin + fout)) ** 0.5                   # glorot-ish
        params[f"w{i}"] = scale * jax.random.normal(keys[2 * (i - 1)], (fin, fout), jnp.float32)
        params[f"b{i}"] = 0.01 * jax.random.normal(keys[2 * (i - 1) + 1], (1, fout), jnp.float32)
    for i, (fin, fout) in enumerate(lin_dims, start=1):
        scale = (2.0 / (fin + fout)) ** 0.5
        params[f"lw{i}"] = scale * jax.random.normal(keys[6 + 2 * (i - 1)], (fin, fout), jnp.float32)
        params[f"lb{i}"] = 0.01 * jax.random.normal(keys[6 + 2 * (i - 1) + 1], (1, fout), jnp.float32)
    return params


def gcn_forward_reference(params, x, edge_index, edge_attr, batch, num_graphs):
    # pure-JAX fp32 reference (same semantics) for a sanity check
    a_hat = build_normalized_adjacency(edge_index, edge_attr, x.shape[0])
    pool_mat = build_mean_pool_matrix(batch, num_graphs)

    def conv(h, w, b):
        return jnp.maximum(a_hat @ (h @ w) + b, 0.0)

    h = conv(x, params["w1"], params["b1"])
    h = conv(h, params["w2"], params["b2"])
    h = conv(h, params["w3"], params["b3"])
    pooled = pool_mat @ h
    z = jnp.maximum(pooled @ params["lw1"] + params["lb1"], 0.0)
    return z @ params["lw2"] + params["lb2"]


# --------------------------------- main ---------------------------------------

if __name__ == "__main__":
    num_features = 8
    num_classes = 4
    num_graphs = 2
    nodes_per_graph = 8
    num_nodes = num_graphs * nodes_per_graph   # 16

    key = jax.random.PRNGKey(0)
    k_x, k_w, k_e, k_x2 = jax.random.split(key, 4)

    # node features
    x = jax.random.normal(k_x, (num_nodes, num_features), jnp.float32)

    # bidirectional ring edges within each graph
    srcs, dsts = [], []
    for g in range(num_graphs):
        base = g * nodes_per_graph
        for i in range(nodes_per_graph):
            a = base + i
            b = base + (i + 1) % nodes_per_graph
            srcs += [a, b]
            dsts += [b, a]
    edge_index = jnp.array([srcs, dsts], dtype=jnp.int32)            # (2, 32)
    edge_attr = jax.random.uniform(k_e, (edge_index.shape[1],),
                                   jnp.float32, minval=0.5, maxval=1.5)
    batch = jnp.repeat(jnp.arange(num_graphs, dtype=jnp.int32), nodes_per_graph)

    params = init_params(k_w, num_features, num_classes)

    # ---- single forward (matches the PyTorch module's forward) ----
    out = gcn_forward(params, x, edge_index, edge_attr, batch,
                      num_graphs=num_graphs, num_classes=num_classes)
    out = jax.block_until_ready(out)
    assert out.shape == (num_graphs, num_classes)
    assert bool(jnp.all(jnp.isfinite(out)))

    ref = gcn_forward_reference(params, x, edge_index, edge_attr, batch, num_graphs)
    ref = jax.block_until_ready(ref)
    assert bool(jnp.allclose(out, ref, rtol=5e-2, atol=5e-2)), \
        f"max abs diff {float(jnp.max(jnp.abs(out - ref)))}"

    # ---- batched path: 2 independent graph batches in one pallas_call ----
    # (parallel grid axis -> both TensorCores on v7x, pipelined DMA elsewhere)
    x2 = jax.random.normal(k_x2, (num_nodes, num_features), jnp.float32)
    edge_attr2 = edge_attr * 1.5
    a1 = build_normalized_adjacency(edge_index, edge_attr, num_nodes)
    a2 = build_normalized_adjacency(edge_index, edge_attr2, num_nodes)
    pool = build_mean_pool_matrix(batch, num_graphs)

    out_b = gcn_forward_batched(params,
                                jnp.stack([a1, a2]),
                                jnp.stack([x, x2]),
                                jnp.stack([pool, pool]),
                                num_graphs, num_classes)
    out_b = jax.block_until_ready(out_b)
    ref1 = gcn_forward_reference(params, x, edge_index, edge_attr, batch, num_graphs)
    ref2 = gcn_forward_reference(params, x2, edge_index, edge_attr2, batch, num_graphs)
    assert bool(jnp.allclose(out_b[0], ref1, rtol=5e-2, atol=5e-2))
    assert bool(jnp.allclose(out_b[1], ref2, rtol=5e-2, atol=5e-2))

    print("KERNEL_OK")
</pallas_src>

<mosaic_0001>
module attributes {stable_mosaic.version = 11 : i64} {
  func.func @fused_gcn_kernel(%arg0: i32, %arg1: memref<1x16x16xf32, #tpu.memory_space<vmem>>, %arg2: memref<1x16x128xbf16, #tpu.memory_space<vmem>>, %arg3: memref<1x8x16xf32, #tpu.memory_space<vmem>>, %arg4: memref<3x128x128xbf16, #tpu.memory_space<vmem>>, %arg5: memref<2x128x128xbf16, #tpu.memory_space<vmem>>, %arg6: memref<8x128xf32, #tpu.memory_space<vmem>>, %arg7: memref<1x8x128xf32, #tpu.memory_space<vmem>>) attributes {dimension_semantics = [#tpu.dimension_semantics<parallel>], iteration_bounds = array<i64: 1>, scalar_prefetch = 0 : i64, scratch_operands = 0 : i64, tpu.core_type = #tpu.core_type<tc>, window_params = [{transform_indices = @transform_0, window_bounds = array<i64: 1, 16, 16>}, {transform_indices = @transform_1, window_bounds = array<i64: 1, 16, 128>}, {transform_indices = @transform_2, window_bounds = array<i64: 1, 8, 16>}, {pipeline_mode = #tpu.pipeline_mode<synchronous>, transform_indices = @transform_3, window_bounds = array<i64: 3, 128, 128>}, {pipeline_mode = #tpu.pipeline_mode<synchronous>, transform_indices = @transform_4, window_bounds = array<i64: 2, 128, 128>}, {pipeline_mode = #tpu.pipeline_mode<synchronous>, transform_indices = @transform_5, window_bounds = array<i64: 8, 128>}, {transform_indices = @transform_6, window_bounds = array<i64: 1, 8, 128>}]} {
    %c0 = arith.constant 0 : index
    %c0_0 = arith.constant 0 : index
    %c0_1 = arith.constant 0 : index
    %0 = vector.load %arg1[%c0, %c0_0, %c0_1] : memref<1x16x16xf32, #tpu.memory_space<vmem>>, vector<1x16x16xf32>
    %1 = vector.shape_cast %0 : vector<1x16x16xf32> to vector<16x16xf32>
    %c0_2 = arith.constant 0 : index
    %c0_3 = arith.constant 0 : index
    %c0_4 = arith.constant 0 : index
    %2 = vector.load %arg2[%c0_2, %c0_3, %c0_4] : memref<1x16x128xbf16, #tpu.memory_space<vmem>>, vector<1x16x128xbf16>
    %3 = vector.shape_cast %2 : vector<1x16x128xbf16> to vector<16x128xbf16>
    %c0_5 = arith.constant 0 : index
    %c0_6 = arith.constant 0 : index
    %4 = vector.load %arg6[%c0_5, %c0_6] : memref<8x128xf32, #tpu.memory_space<vmem>>, vector<8x128xf32>
    %c0_7 = arith.constant 0 : index
    %c0_8 = arith.constant 0 : index
    %c0_9 = arith.constant 0 : index
    %5 = vector.load %arg4[%c0_7, %c0_8, %c0_9] : memref<3x128x128xbf16, #tpu.memory_space<vmem>>, vector<1x128x128xbf16>
    %6 = vector.shape_cast %5 : vector<1x128x128xbf16> to vector<128x128xbf16>
    %7 = vector.extract_strided_slice %4 {offsets = [0, 0], sizes = [1, 128], strides = [1, 1]} : vector<8x128xf32> to vector<1x128xf32>
    %cst = arith.constant dense<0.000000e+00> : vector<16x128xf32>
    %8 = tpu.matmul %3, %6, %cst {dimension_numbers = #tpu.dot_dimension_numbers<[1], [0], [0], [1], [0, 0, 1, 1], [], []>} : vector<16x128xbf16>, vector<128x128xbf16>, vector<16x128xf32> -> vector<16x128xf32>
    %cst_10 = arith.constant dense<0.000000e+00> : vector<16x128xf32>
    %9 = tpu.matmul %1, %8, %cst_10 {dimension_numbers = #tpu.dot_dimension_numbers<[1], [0], [0], [1], [0, 0, 1, 1], [], []>} : vector<16x16xf32>, vector<16x128xf32>, vector<16x128xf32> -> vector<16x128xf32>
    %10 = vector.broadcast %7 : vector<1x128xf32> to vector<16x128xf32>
    %11 = arith.addf %9, %10 : vector<16x128xf32>
    %cst_11 = arith.constant 0.000000e+00 : f32
    %12 = vector.broadcast %cst_11 : f32 to vector<16x128xf32>
    %13 = arith.maximumf %11, %12 : vector<16x128xf32>
    %14 = arith.truncf %13 : vector<16x128xf32> to vector<16x128xbf16>
    %c1 = arith.constant 1 : index
    %c0_12 = arith.constant 0 : index
    %c0_13 = arith.constant 0 : index
    %15 = vector.load %arg4[%c1, %c0_12, %c0_13] : memref<3x128x128xbf16, #tpu.memory_space<vmem>>, vector<1x128x128xbf16>
    %16 = vector.shape_cast %15 : vector<1x128x128xbf16> to vector<128x128xbf16>
    %17 = vector.extract_strided_slice %4 {offsets = [1, 0], sizes = [1, 128], strides = [1, 1]} : vector<8x128xf32> to vector<1x128xf32>
    %cst_14 = arith.constant dense<0.000000e+00> : vector<16x128xf32>
    %18 = tpu.matmul %14, %16, %cst_14 {dimension_numbers = #tpu.dot_dimension_numbers<[1], [0], [0], [1], [0, 0, 1, 1], [], []>} : vector<16x128xbf16>, vector<128x128xbf16>, vector<16x128xf32> -> vector<16x128xf32>
    %cst_15 = arith.constant dense<0.000000e+00> : vector<16x128xf32>
    %19 = tpu.matmul %1, %18, %cst_15 {dimension_numbers = #tpu.dot_dimension_numbers<[1], [0], [0], [1], [0, 0, 1, 1], [], []>} : vector<16x16xf32>, vector<16x128xf32>, vector<16x128xf32> -> vector<16x128xf32>
    %20 = vector.broadcast %17 : vector<1x128xf32> to vector<16x128xf32>
    %21 = arith.addf %19, %20 : vector<16x128xf32>
    %cst_16 = arith.constant 0.000000e+00 : f32
    %22 = vector.broadcast %cst_16 : f32 to vector<16x128xf32>
    %23 = arith.maximumf %21, %22 : vector<16x128xf32>
    %24 = arith.truncf %23 : vector<16x128xf32> to vector<16x128xbf16>
    %c2 = arith.constant 2 : index
    %c0_17 = arith.constant 0 : index
    %c0_18 = arith.constant 0 : index
    %25 = vector.load %arg4[%c2, %c0_17, %c0_18] : memref<3x128x128xbf16, #tpu.memory_space<vmem>>, vector<1x128x128xbf16>
    %26 = vector.shape_cast %25 : vector<1x128x128xbf16> to vector<128x128xbf16>
    %27 = vector.extract_strided_slice %4 {offsets = [2, 0], sizes = [1, 128], strides = [1, 1]} : vector<8x128xf32> to vector<1x128xf32>
    %cst_19 = arith.constant dense<0.000000e+00> : vector<16x128xf32>
    %28 = tpu.matmul %24, %26, %cst_19 {dimension_numbers = #tpu.dot_dimension_numbers<[1], [0], [0], [1], [0, 0, 1, 1], [], []>} : vector<16x128xbf16>, vector<128x128xbf16>, vector<16x128xf32> -> vector<16x128xf32>
    %cst_20 = arith.constant dense<0.000000e+00> : vector<16x128xf32>
    %29 = tpu.matmul %1, %28, %cst_20 {dimension_numbers = #tpu.dot_dimension_numbers<[1], [0], [0], [1], [0, 0, 1, 1], [], []>} : vector<16x16xf32>, vector<16x128xf32>, vector<16x128xf32> -> vector<16x128xf32>
    %30 = vector.broadcast %27 : vector<1x128xf32> to vector<16x128xf32>
    %31 = arith.addf %29, %30 : vector<16x128xf32>
    %cst_21 = arith.constant 0.000000e+00 : f32
    %32 = vector.broadcast %cst_21 : f32 to vector<16x128xf32>
    %33 = arith.maximumf %31, %32 : vector<16x128xf32>
    %34 = arith.truncf %33 : vector<16x128xf32> to vector<16x128xbf16>
    %c0_22 = arith.constant 0 : index
    %c0_23 = arith.constant 0 : index
    %c0_24 = arith.constant 0 : index
    %35 = vector.load %arg3[%c0_22, %c0_23, %c0_24] : memref<1x8x16xf32, #tpu.memory_space<vmem>>, vector<1x8x16xf32>
    %36 = vector.shape_cast %35 : vector<1x8x16xf32> to vector<8x16xf32>
    %37 = arith.extf %34 : vector<16x128xbf16> to vector<16x128xf32>
    %cst_25 = arith.constant dense<0.000000e+00> : vector<8x128xf32>
    %38 = tpu.matmul %36, %37, %cst_25 {dimension_numbers = #tpu.dot_dimension_numbers<[1], [0], [0], [1], [0, 0, 1, 1], [], []>} : vector<8x16xf32>, vector<16x128xf32>, vector<8x128xf32> -> vector<8x128xf32>
    %39 = arith.truncf %38 : vector<8x128xf32> to vector<8x128xbf16>
    %c0_26 = arith.constant 0 : index
    %c0_27 = arith.constant 0 : index
    %c0_28 = arith.constant 0 : index
    %40 = vector.load %arg5[%c0_26, %c0_27, %c0_28] : memref<2x128x128xbf16, #tpu.memory_space<vmem>>, vector<1x128x128xbf16>
    %41 = vector.shape_cast %40 : vector<1x128x128xbf16> to vector<128x128xbf16>
    %cst_29 = arith.constant dense<0.000000e+00> : vector<8x128xf32>
    %42 = tpu.matmul %39, %41, %cst_29 {dimension_numbers = #tpu.dot_dimension_numbers<[1], [0], [0], [1], [0, 0, 1, 1], [], []>} : vector<8x128xbf16>, vector<128x128xbf16>, vector<8x128xf32> -> vector<8x128xf32>
    %43 = vector.extract_strided_slice %4 {offsets = [3, 0], sizes = [1, 128], strides = [1, 1]} : vector<8x128xf32> to vector<1x128xf32>
    %44 = vector.broadcast %43 : vector<1x128xf32> to vector<8x128xf32>
    %45 = arith.addf %42, %44 : vector<8x128xf32>
    %cst_30 = arith.constant 0.000000e+00 : f32
    %46 = vector.broadcast %cst_30 : f32 to vector<8x128xf32>
    %47 = arith.maximumf %45, %46 : vector<8x128xf32>
    %48 = arith.truncf %47 : vector<8x128xf32> to vector<8x128xbf16>
    %c1_31 = arith.constant 1 : index
    %c0_32 = arith.constant 0 : index
    %c0_33 = arith.constant 0 : index
    %49 = vector.load %arg5[%c1_31, %c0_32, %c0_33] : memref<2x128x128xbf16, #tpu.memory_space<vmem>>, vector<1x128x128xbf16>
    %50 = vector.shape_cast %49 : vector<1x128x128xbf16> to vector<128x128xbf16>
    %cst_34 = arith.constant dense<0.000000e+00> : vector<8x128xf32>
    %51 = tpu.matmul %48, %50, %cst_34 {dimension_numbers = #tpu.dot_dimension_numbers<[1], [0], [0], [1], [0, 0, 1, 1], [], []>} : vector<8x128xbf16>, vector<128x128xbf16>, vector<8x128xf32> -> vector<8x128xf32>
    %52 = vector.extract_strided_slice %4 {offsets = [4, 0], sizes = [1, 128], strides = [1, 1]} : vector<8x128xf32> to vector<1x128xf32>
    %53 = vector.broadcast %52 : vector<1x128xf32> to vector<8x128xf32>
    %54 = arith.addf %51, %53 : vector<8x128xf32>
    %c0_35 = arith.constant 0 : index
    %c0_36 = arith.constant 0 : index
    %c0_37 = arith.constant 0 : index
    %55 = vector.load %arg7[%c0_35, %c0_36, %c0_37] : memref<1x8x128xf32, #tpu.memory_space<vmem>>, vector<1x8x128xf32>
    %56 = vector.shape_cast %55 : vector<1x8x128xf32> to vector<8x128xf32>
    %57 = vector.shape_cast %54 : vector<8x128xf32> to vector<1x8x128xf32>
    tpu.vector_store %arg7[%c0_35, %c0_36, %c0_37], %57 {strides = array<i32>} : memref<1x8x128xf32, #tpu.memory_space<vmem>>, vector<1x8x128xf32>,
    return
  }
  func.func @transform_0(%arg0: i32) -> (i32, i32, i32) {
    %c0_i32 = arith.constant 0 : i32
    %c0_i32_0 = arith.constant 0 : i32
    %c0_i32_1 = arith.constant 0 : i32
    return %arg0, %c0_i32, %c0_i32_0 : i32, i32, i32
  }
  func.func @transform_1(%arg0: i32) -> (i32, i32, i32) {
    %c0_i32 = arith.constant 0 : i32
    %c0_i32_0 = arith.constant 0 : i32
    %c0_i32_1 = arith.constant 0 : i32
    return %arg0, %c0_i32, %c0_i32_0 : i32, i32, i32
  }
  func.func @transform_2(%arg0: i32) -> (i32, i32, i32) {
    %c0_i32 = arith.constant 0 : i32
    %c0_i32_0 = arith.constant 0 : i32
    %c0_i32_1 = arith.constant 0 : i32
    return %arg0, %c0_i32, %c0_i32_0 : i32, i32, i32
  }
  func.func @transform_3(%arg0: i32) -> (i32, i32, i32) {
    %c0_i32 = arith.constant 0 : i32
    %c0_i32_0 = arith.constant 0 : i32
    %c0_i32_1 = arith.constant 0 : i32
    %c0_i32_2 = arith.constant 0 : i32
    return %c0_i32, %c0_i32_0, %c0_i32_1 : i32, i32, i32
  }
  func.func @transform_4(%arg0: i32) -> (i32, i32, i32) {
    %c0_i32 = arith.constant 0 : i32
    %c0_i32_0 = arith.constant 0 : i32
    %c0_i32_1 = arith.constant 0 : i32
    %c0_i32_2 = arith.constant 0 : i32
    return %c0_i32, %c0_i32_0, %c0_i32_1 : i32, i32, i32
  }
  func.func @transform_5(%arg0: i32) -> (i32, i32) {
    %c0_i32 = arith.constant 0 : i32
    %c0_i32_0 = arith.constant 0 : i32
    %c0_i32_1 = arith.constant 0 : i32
    return %c0_i32, %c0_i32_0 : i32, i32
  }
  func.func @transform_6(%arg0: i32) -> (i32, i32, i32) {
    %c0_i32 = arith.constant 0 : i32
    %c0_i32_0 = arith.constant 0 : i32
    %c0_i32_1 = arith.constant 0 : i32
    return %arg0, %c0_i32, %c0_i32_0 : i32, i32, i32
  }
}

</mosaic_0001>

<llo_original>
// kernel: _gcn_fused_padded.1
$region0: #{_gcn_fused_padded.1}
  #allocation0 [shape = 'u32[]', space=smem, size = 0x4, offset = 0x4, fixed_abs, tag = 'smem constant byte address 0x4 - core index']
  #allocation1 [shape = 'u32[72,128]{1,0:T(1,128)}', space=vmem, size = 0x9000, scoped, tag = 'internal scratch']
  %s0 = inlined_call_operand.vmem [shape: f32[1,16,16], index: 0, kind: input, shape index: {}]
  %s1 = inlined_call_operand.vmem [shape: bf16[1,16,128], index: 1, kind: input, shape index: {}]
  %s2 = inlined_call_operand.vmem [shape: f32[1,8,16], index: 2, kind: input, shape index: {}]
  %s3 = inlined_call_operand.vmem [shape: bf16[3,128,128], index: 3, kind: input, shape index: {}]
  %s4 = inlined_call_operand.vmem [shape: bf16[2,128,128], index: 4, kind: input, shape index: {}]
  %s5 = inlined_call_operand.vmem [shape: f32[8,128], index: 5, kind: input, shape index: {}]
  %s6 = inlined_call_operand.hbm [shape: f32[1,8,128], index: 6, kind: output, shape index: {}]
  %s7 = sld [smem:[#allocation0]]
  $region34: #{_gcn_fused_padded.1} parent=0
    _
  %s9 = ssub.s32 1, %s7
  %s10 = scalar_select 0, %s9, %s7
  $region1: #{_gcn_fused_padded.1} parent=0
    #allocation2 [shape = 'u8[4096]{0}', space=vmem, size = 0x1000, scoped, tag = 'output window, operand 0, single buffered']
    #allocation3 [shape = 's32[1]{0}', space=sflag, size = 0x4, scoped, tag = 'scoped memory for _gcn_fused_padded.1']
    %11 = vsyncpa [#allocation3], 0
    // Predicated region
    $region2: #{_gcn_fused_padded.1} parent=1 // pred_check
      _
    $region3: #{_gcn_fused_padded.1} parent=1 // pred_check_branch
      %13 = sbr.rel (0) target = $region5
    $region4: #{_gcn_fused_padded.1} parent=1 // pred_region
      _
    $region5: #{_gcn_fused_padded.1} parent=1 // pred_fallthru
      _
    // Predicated region
    $region6: #{_gcn_fused_padded.1} parent=1 // pred_check
      _
    $region7: #{_gcn_fused_padded.1} parent=1 // pred_check_branch
      %15 = sbr.rel (0) target = $region9
    $region8: #{_gcn_fused_padded.1} parent=1 // pred_region
      _
    $region9: #{_gcn_fused_padded.1} parent=1 // pred_fallthru
      _
    // Predicated region
    $region10: #{_gcn_fused_padded.1} parent=1 // pred_check
      _
    $region11: #{_gcn_fused_padded.1} parent=1 // pred_check_branch
      %17 = sbr.rel (0) target = $region13
    $region12: #{_gcn_fused_padded.1} parent=1 // pred_region
      _
    $region13: #{_gcn_fused_padded.1} parent=1 // pred_fallthru
      _
    // Predicated region
    $region14: #{_gcn_fused_padded.1} parent=1 // pred_check
      _
    $region15: #{_gcn_fused_padded.1} parent=1 // pred_check_branch
      %19 = sbr.rel (0) target = $region17
    $region16: #{_gcn_fused_padded.1} parent=1 // pred_region
      _
    $region17: #{_gcn_fused_padded.1} parent=1 // pred_fallthru
      _
    // Predicated region
    $region18: #{_gcn_fused_padded.1} parent=1 // pred_check
      _
    $region19: #{_gcn_fused_padded.1} parent=1 // pred_check_branch
      %21 = sbr.rel (0) target = $region21
    $region20: #{_gcn_fused_padded.1} parent=1 // pred_region
      _
    $region21: #{_gcn_fused_padded.1} parent=1 // pred_fallthru
      _
    // Predicated region
    $region22: #{_gcn_fused_padded.1} parent=1 // pred_check
      _
    $region23: #{_gcn_fused_padded.1} parent=1 // pred_check_branch
      %23 = sbr.rel (0) target = $region25
    $region24: #{_gcn_fused_padded.1} parent=1 // pred_region
      _
    $region25: #{_gcn_fused_padded.1} parent=1 // pred_fallthru
      _
    %v24 = vld [vmem:[%s0] sm:$0xff]
    %v25 = vld [vmem:[%s0 + $0x8] sm:$0xff]
    %v26 = vld [vmem:[%s1] sm:$0xf]
    %v27 = vld [vmem:[%s1 + $0x4] sm:$0xf]
    %v28 = vld [vmem:[%s5] sm:$0xff]
    %v29 = vld [vmem:[%s3] sm:$0xf]
    %v30 = vld [vmem:[%s3 + $0x4] sm:$0xf]
    %v31 = vld [vmem:[%s3 + $0x8] sm:$0xf]
    %v32 = vld [vmem:[%s3 + $0xc] sm:$0xf]
    %v33 = vld [vmem:[%s3 + $0x10] sm:$0xf]
    %v34 = vld [vmem:[%s3 + $0x14] sm:$0xf]
    %v35 = vld [vmem:[%s3 + $0x18] sm:$0xf]
    %v36 = vld [vmem:[%s3 + $0x1c] sm:$0xf]
    %v37 = vld [vmem:[%s3 + $0x20] sm:$0xf]
    %v38 = vld [vmem:[%s3 + $0x24] sm:$0xf]
    %v39 = vld [vmem:[%s3 + $0x28] sm:$0xf]
    %v40 = vld [vmem:[%s3 + $0x2c] sm:$0xf]
    %v41 = vld [vmem:[%s3 + $0x30] sm:$0xf]
    %v42 = vld [vmem:[%s3 + $0x34] sm:$0xf]
    %v43 = vld [vmem:[%s3 + $0x38] sm:$0xf]
    %v44 = vld [vmem:[%s3 + $0x3c] sm:$0xf]
    %v47 = vunpack.c.l.b16 %v26
    %v48 = vunpack.c.l.b16 %v27
    %v49 = vpack.c.b16 %v48, %v47
    %v67 = vunpack.c.l.b16 %v29
    %v68 = vunpack.c.l.b16 %v30
    %v69 = vunpack.c.l.b16 %v31
    %v70 = vunpack.c.l.b16 %v32
    %v71 = vunpack.c.l.b16 %v33
    %v72 = vunpack.c.l.b16 %v34
    %v73 = vunpack.c.l.b16 %v35
    %v74 = vunpack.c.l.b16 %v36
    %v75 = vunpack.c.l.b16 %v37
    %v76 = vunpack.c.l.b16 %v38
    %v77 = vunpack.c.l.b16 %v39
    %v78 = vunpack.c.l.b16 %v40
    %v79 = vunpack.c.l.b16 %v41
    %v80 = vunpack.c.l.b16 %v42
    %v81 = vunpack.c.l.b16 %v43
    %v82 = vunpack.c.l.b16 %v44
    %v83 = vpack.c.b16 %v68, %v67
    %v84 = vpack.c.b16 %v70, %v69
    %v85 = vpack.c.b16 %v72, %v71
    %v86 = vpack.c.b16 %v74, %v73
    %v87 = vpack.c.b16 %v76, %v75
    %v88 = vpack.c.b16 %v78, %v77
    %v89 = vpack.c.b16 %v80, %v79
    %v90 = vpack.c.b16 %v82, %v81
    %99 = vmatpush.bf16.msra.mxu0 %v90
    %100 = vmatpush.bf16.msra.mxu0 %v89
    %101 = vmatpush.bf16.msra.mxu0 %v88
    %102 = vmatpush.bf16.msra.mxu0 %v87
    %103 = vmatpush.bf16.msra.mxu0 %v86
    %104 = vmatpush.bf16.msra.mxu0 %v85
    %105 = vmatpush.bf16.msra.mxu0 %v84
    %106 = vmatpush.bf16.msra.mxu0 %v83
    %107 = vmatmul.bf16.gmra.mxu0 %v49
    %v108 = vpop.f32.mrf.mxu0
    %v109 = vadd.f32 0.0, %v108
    %v110 = vpop.f32.mrf.mxu0
    %v111 = vadd.f32 0.0, %v110
    %112 = vdwg.mxu0
    %v113 = vperm.slane %v28, 0
    %vm114 = vcmask 130048
    %v116 = vsel %vm114, %v24, 0
    %v119 = vsel %vm114, %v25, 0
    %121 = vmatpush.msra.mxu0 0.0
    %122 = vmatpush.msra.mxu0 0.0
    %123 = vmatpush.msra.mxu0 0.0
    %124 = vmatpush.msra.mxu0 0.0
    %125 = vmatpush.msra.mxu0 0.0
    %126 = vmatpush.msra.mxu0 0.0
    %127 = vmatpush.msra.mxu0 0.0
    %128 = vmatpush.msra.mxu0 0.0
    %129 = vmatpush.msra.mxu0 0.0
    %130 = vmatpush.msra.mxu0 0.0
    %131 = vmatpush.msra.mxu0 0.0
    %132 = vmatpush.msra.mxu0 0.0
    %133 = vmatpush.msra.mxu0 0.0
    %134 = vmatpush.msra.mxu0 0.0
    %135 = vmatpush.msra.mxu0 %v111
    %136 = vmatpush.msra.mxu0 %v109
    %137 = vmatmul.f32.gmra.mxu0 %v116
    %v138 = vpop.f32.mrf.mxu0
    %v139 = vadd.f32 %v113, %v138
    %140 = vmatmul.f32.gmra.mxu0 %v119
    %v141 = vpop.f32.mrf.mxu0
    %v142 = vadd.f32 %v113, %v141
    %143 = vdwg.mxu0
    %v144 = vmax.f32 %v139, 0.0
    %v145 = vmax.f32 %v142, 0.0
    %v146 = vpack.c.bf16 %v145, %v144
    %s147 = scalar_lea.vmem %s3, 64
    %v148 = vld [vmem:[%s147] sm:$0xf]
    %v149 = vld [vmem:[%s147 + $0x4] sm:$0xf]
    %v150 = vld [vmem:[%s147 + $0x8] sm:$0xf]
    %v151 = vld [vmem:[%s147 + $0xc] sm:$0xf]
    %v152 = vld [vmem:[%s147 + $0x10] sm:$0xf]
    %v153 = vld [vmem:[%s147 + $0x14] sm:$0xf]
    %v154 = vld [vmem:[%s147 + $0x18] sm:$0xf]
    %v155 = vld [vmem:[%s147 + $0x1c] sm:$0xf]
    %v156 = vld [vmem:[%s147 + $0x20] sm:$0xf]
    %v157 = vld [vmem:[%s147 + $0x24] sm:$0xf]
    %v158 = vld [vmem:[%s147 + $0x28] sm:$0xf]
    %v159 = vld [vmem:[%s147 + $0x2c] sm:$0xf]
    %v160 = vld [vmem:[%s147 + $0x30] sm:$0xf]
    %v161 = vld [vmem:[%s147 + $0x34] sm:$0xf]
    %v162 = vld [vmem:[%s147 + $0x38] sm:$0xf]
    %v163 = vld [vmem:[%s147 + $0x3c] sm:$0xf]
    %v180 = vunpack.c.l.b16 %v148
    %v181 = vunpack.c.l.b16 %v149
    %v182 = vunpack.c.l.b16 %v150
    %v183 = vunpack.c.l.b16 %v151
    %v184 = vunpack.c.l.b16 %v152
    %v185 = vunpack.c.l.b16 %v153
    %v186 = vunpack.c.l.b16 %v154
    %v187 = vunpack.c.l.b16 %v155
    %v188 = vunpack.c.l.b16 %v156
    %v189 = vunpack.c.l.b16 %v157
    %v190 = vunpack.c.l.b16 %v158
    %v191 = vunpack.c.l.b16 %v159
    %v192 = vunpack.c.l.b16 %v160
    %v193 = vunpack.c.l.b16 %v161
    %v194 = vunpack.c.l.b16 %v162
    %v195 = vunpack.c.l.b16 %v163
    %v196 = vpack.c.b16 %v181, %v180
    %v197 = vpack.c.b16 %v183, %v182
    %v198 = vpack.c.b16 %v185, %v184
    %v199 = vpack.c.b16 %v187, %v186
    %v200 = vpack.c.b16 %v189, %v188
    %v201 = vpack.c.b16 %v191, %v190
    %v202 = vpack.c.b16 %v193, %v192
    %v203 = vpack.c.b16 %v195, %v194
    %212 = vmatpush.bf16.msra.mxu0 %v203
    %213 = vmatpush.bf16.msra.mxu0 %v202
    %214 = vmatpush.bf16.msra.mxu0 %v201
    %215 = vmatpush.bf16.msra.mxu0 %v200
    %216 = vmatpush.bf16.msra.mxu0 %v199
    %217 = vmatpush.bf16.msra.mxu0 %v198
    %218 = vmatpush.bf16.msra.mxu0 %v197
    %219 = vmatpush.bf16.msra.mxu0 %v196
    %220 = vmatmul.bf16.gmra.mxu0 %v146
    %v221 = vpop.f32.mrf.mxu0
    %v222 = vadd.f32 0.0, %v221
    %v223 = vpop.f32.mrf.mxu0
    %v224 = vadd.f32 0.0, %v223
    %225 = vdwg.mxu0
    %v226 = vperm.slane %v28, 1
    %227 = vmatpush.msra.mxu0 0.0
    %228 = vmatpush.msra.mxu0 0.0
    %229 = vmatpush.msra.mxu0 0.0
    %230 = vmatpush.msra.mxu0 0.0
    %231 = vmatpush.msra.mxu0 0.0
    %232 = vmatpush.msra.mxu0 0.0
    %233 = vmatpush.msra.mxu0 0.0
    %234 = vmatpush.msra.mxu0 0.0
    %235 = vmatpush.msra.mxu0 0.0
    %236 = vmatpush.msra.mxu0 0.0
    %237 = vmatpush.msra.mxu0 0.0
    %238 = vmatpush.msra.mxu0 0.0
    %239 = vmatpush.msra.mxu0 0.0
    %240 = vmatpush.msra.mxu0 0.0
    %241 = vmatpush.msra.mxu0 %v224
    %242 = vmatpush.msra.mxu0 %v222
    %243 = vmatmul.f32.gmra.mxu0 %v116
    %v244 = vpop.f32.mrf.mxu0
    %v245 = vadd.f32 %v226, %v244
    %246 = vmatmul.f32.gmra.mxu0 %v119
    %v247 = vpop.f32.mrf.mxu0
    %v248 = vadd.f32 %v226, %v247
    %249 = vdwg.mxu0
    %v250 = vmax.f32 %v245, 0.0
    %v251 = vmax.f32 %v248, 0.0
    %v252 = vpack.c.bf16 %v251, %v250
    %s253 = scalar_lea.vmem %s3, 128
    %v254 = vld [vmem:[%s253] sm:$0xf]
    %v255 = vld [vmem:[%s253 + $0x4] sm:$0xf]
    %v256 = vld [vmem:[%s253 + $0x8] sm:$0xf]
    %v257 = vld [vmem:[%s253 + $0xc] sm:$0xf]
    %v258 = vld [vmem:[%s253 + $0x10] sm:$0xf]
    %v259 = vld [vmem:[%s253 + $0x14] sm:$0xf]
    %v260 = vld [vmem:[%s253 + $0x18] sm:$0xf]
    %v261 = vld [vmem:[%s253 + $0x1c] sm:$0xf]
    %v262 = vld [vmem:[%s253 + $0x20] sm:$0xf]
    %v263 = vld [vmem:[%s253 + $0x24] sm:$0xf]
    %v264 = vld [vmem:[%s253 + $0x28] sm:$0xf]
    %v265 = vld [vmem:[%s253 + $0x2c] sm:$0xf]
    %v266 = vld [vmem:[%s253 + $0x30] sm:$0xf]
    %v267 = vld [vmem:[%s253 + $0x34] sm:$0xf]
    %v268 = vld [vmem:[%s253 + $0x38] sm:$0xf]
    %v269 = vld [vmem:[%s253 + $0x3c] sm:$0xf]
    %v286 = vunpack.c.l.b16 %v254
    %v287 = vunpack.c.l.b16 %v255
    %v288 = vunpack.c.l.b16 %v256
    %v289 = vunpack.c.l.b16 %v257
    %v290 = vunpack.c.l.b16 %v258
    %v291 = vunpack.c.l.b16 %v259
    %v292 = vunpack.c.l.b16 %v260
    %v293 = vunpack.c.l.b16 %v261
    %v294 = vunpack.c.l.b16 %v262
    %v295 = vunpack.c.l.b16 %v263
    %v296 = vunpack.c.l.b16 %v264
    %v297 = vunpack.c.l.b16 %v265
    %v298 = vunpack.c.l.b16 %v266
    %v299 = vunpack.c.l.b16 %v267
    %v300 = vunpack.c.l.b16 %v268
    %v301 = vunpack.c.l.b16 %v269
    %v302 = vpack.c.b16 %v287, %v286
    %v303 = vpack.c.b16 %v289, %v288
    %v304 = vpack.c.b16 %v291, %v290
    %v305 = vpack.c.b16 %v293, %v292
    %v306 = vpack.c.b16 %v295, %v294
    %v307 = vpack.c.b16 %v297, %v296
    %v308 = vpack.c.b16 %v299, %v298
    %v309 = vpack.c.b16 %v301, %v300
    %318 = vmatpush.bf16.msra.mxu0 %v309
    %319 = vmatpush.bf16.msra.mxu0 %v308
    %320 = vmatpush.bf16.msra.mxu0 %v307
    %321 = vmatpush.bf16.msra.mxu0 %v306
    %322 = vmatpush.bf16.msra.mxu0 %v305
    %323 = vmatpush.bf16.msra.mxu0 %v304
    %324 = vmatpush.bf16.msra.mxu0 %v303
    %325 = vmatpush.bf16.msra.mxu0 %v302
    %326 = vmatmul.bf16.gmra.mxu0 %v252
    %v327 = vpop.f32.mrf.mxu0
    %v328 = vadd.f32 0.0, %v327
    %v329 = vpop.f32.mrf.mxu0
    %v330 = vadd.f32 0.0, %v329
    %331 = vdwg.mxu0
    %v332 = vperm.slane %v28, 2
    %333 = vmatpush.msra.mxu0 0.0
    %334 = vmatpush.msra.mxu0 0.0
    %335 = vmatpush.msra.mxu0 0.0
    %336 = vmatpush.msra.mxu0 0.0
    %337 = vmatpush.msra.mxu0 0.0
    %338 = vmatpush.msra.mxu0 0.0
    %339 = vmatpush.msra.mxu0 0.0
    %340 = vmatpush.msra.mxu0 0.0
    %341 = vmatpush.msra.mxu0 0.0
    %342 = vmatpush.msra.mxu0 0.0
    %343 = vmatpush.msra.mxu0 0.0
    %344 = vmatpush.msra.mxu0 0.0
    %345 = vmatpush.msra.mxu0 0.0
    %346 = vmatpush.msra.mxu0 0.0
    %347 = vmatpush.msra.mxu0 %v330
    %348 = vmatpush.msra.mxu0 %v328
    %349 = vmatmul.f32.gmra.mxu0 %v116
    %v350 = vpop.f32.mrf.mxu0
    %v351 = vadd.f32 %v332, %v350
    %352 = vmatmul.f32.gmra.mxu0 %v119
    %v353 = vpop.f32.mrf.mxu0
    %v354 = vadd.f32 %v332, %v353
    %355 = vdwg.mxu0
    %v356 = vmax.f32 %v351, 0.0
    %v357 = vmax.f32 %v354, 0.0
    %v358 = vpack.c.bf16 %v357, %v356
    %v359 = vld [vmem:[%s2] sm:$0xff]
    %v360 = vunpack.c.l.bf16 %v358
    %v361 = vunpack.c.h.bf16 %v358
    %v363 = vsel %vm114, %v359, 0
    %365 = vmatpush.msra.mxu0 0.0
    %366 = vmatpush.msra.mxu0 0.0
    %367 = vmatpush.msra.mxu0 0.0
    %368 = vmatpush.msra.mxu0 0.0
    %369 = vmatpush.msra.mxu0 0.0
    %370 = vmatpush.msra.mxu0 0.0
    %371 = vmatpush.msra.mxu0 0.0
    %372 = vmatpush.msra.mxu0 0.0
    %373 = vmatpush.msra.mxu0 0.0
    %374 = vmatpush.msra.mxu0 0.0
    %375 = vmatpush.msra.mxu0 0.0
    %376 = vmatpush.msra.mxu0 0.0
    %377 = vmatpush.msra.mxu0 0.0
    %378 = vmatpush.msra.mxu0 0.0
    %379 = vmatpush.msra.mxu0 %v361
    %380 = vmatpush.msra.mxu0 %v360
    %381 = vmatmul.f32.gmra.mxu0 %v363
    %v382 = vpop.f32.mrf.mxu0
    %v383 = vadd.f32 0.0, %v382
    %384 = vdwg.mxu0
    %v385 = vpack.c.bf16 %v383, %v383
    %v386 = vld [vmem:[%s4] sm:$0xf]
    %v387 = vld [vmem:[%s4 + $0x4] sm:$0xf]
    %v388 = vld [vmem:[%s4 + $0x8] sm:$0xf]
    %v389 = vld [vmem:[%s4 + $0xc] sm:$0xf]
    %v390 = vld [vmem:[%s4 + $0x10] sm:$0xf]
    %v391 = vld [vmem:[%s4 + $0x14] sm:$0xf]
    %v392 = vld [vmem:[%s4 + $0x18] sm:$0xf]
    %v393 = vld [vmem:[%s4 + $0x1c] sm:$0xf]
    %v394 = vld [vmem:[%s4 + $0x20] sm:$0xf]
    %v395 = vld [vmem:[%s4 + $0x24] sm:$0xf]
    %v396 = vld [vmem:[%s4 + $0x28] sm:$0xf]
    %v397 = vld [vmem:[%s4 + $0x2c] sm:$0xf]
    %v398 = vld [vmem:[%s4 + $0x30] sm:$0xf]
    %v399 = vld [vmem:[%s4 + $0x34] sm:$0xf]
    %v400 = vld [vmem:[%s4 + $0x38] sm:$0xf]
    %v401 = vld [vmem:[%s4 + $0x3c] sm:$0xf]
    %v402 = vperm.slane %v28, 3
    %v419 = vunpack.c.l.b16 %v386
    %v420 = vunpack.c.l.b16 %v387
    %v421 = vunpack.c.l.b16 %v388
    %v422 = vunpack.c.l.b16 %v389
    %v423 = vunpack.c.l.b16 %v390
    %v424 = vunpack.c.l.b16 %v391
    %v425 = vunpack.c.l.b16 %v392
    %v426 = vunpack.c.l.b16 %v393
    %v427 = vunpack.c.l.b16 %v394
    %v428 = vunpack.c.l.b16 %v395
    %v429 = vunpack.c.l.b16 %v396
    %v430 = vunpack.c.l.b16 %v397
    %v431 = vunpack.c.l.b16 %v398
    %v432 = vunpack.c.l.b16 %v399
    %v433 = vunpack.c.l.b16 %v400
    %v434 = vunpack.c.l.b16 %v401
    %v435 = vpack.c.b16 %v420, %v419
    %v436 = vpack.c.b16 %v422, %v421
    %v437 = vpack.c.b16 %v424, %v423
    %v438 = vpack.c.b16 %v426, %v425
    %v439 = vpack.c.b16 %v428, %v427
    %v440 = vpack.c.b16 %v430, %v429
    %v441 = vpack.c.b16 %v432, %v431
    %v442 = vpack.c.b16 %v434, %v433
    %451 = vmatpush.bf16.msra.mxu0 %v442
    %452 = vmatpush.bf16.msra.mxu0 %v441
    %453 = vmatpush.bf16.msra.mxu0 %v440
    %454 = vmatpush.bf16.msra.mxu0 %v439
    %455 = vmatpush.bf16.msra.mxu0 %v438
    %456 = vmatpush.bf16.msra.mxu0 %v437
    %457 = vmatpush.bf16.msra.mxu0 %v436
    %458 = vmatpush.bf16.msra.mxu0 %v435
    %459 = vmatmul.bf16.gmra.mxu0 %v385
    %v460 = vpop.f32.mrf.mxu0
    %v461 = vadd.f32 %v402, %v460
    %v462 = vpop.f32.mrf.mxu0
    %463 = vdwg.mxu0
    %v464 = vmax.f32 %v461, 0.0
    %v465 = vpack.c.bf16 %v464, %v464
    %s466 = scalar_lea.vmem %s4, 64
    %v467 = vld [vmem:[%s466] sm:$0xf]
    %v468 = vld [vmem:[%s466 + $0x4] sm:$0xf]
    %v469 = vld [vmem:[%s466 + $0x8] sm:$0xf]
    %v470 = vld [vmem:[%s466 + $0xc] sm:$0xf]
    %v471 = vld [vmem:[%s466 + $0x10] sm:$0xf]
    %v472 = vld [vmem:[%s466 + $0x14] sm:$0xf]
    %v473 = vld [vmem:[%s466 + $0x18] sm:$0xf]
    %v474 = vld [vmem:[%s466 + $0x1c] sm:$0xf]
    %v475 = vld [vmem:[%s466 + $0x20] sm:$0xf]
    %v476 = vld [vmem:[%s466 + $0x24] sm:$0xf]
    %v477 = vld [vmem:[%s466 + $0x28] sm:$0xf]
    %v478 = vld [vmem:[%s466 + $0x2c] sm:$0xf]
    %v479 = vld [vmem:[%s466 + $0x30] sm:$0xf]
    %v480 = vld [vmem:[%s466 + $0x34] sm:$0xf]
    %v481 = vld [vmem:[%s466 + $0x38] sm:$0xf]
    %v482 = vld [vmem:[%s466 + $0x3c] sm:$0xf]
    %v483 = vperm.slane %v28, 4
    %v500 = vunpack.c.l.b16 %v467
    %v501 = vunpack.c.l.b16 %v468
    %v502 = vunpack.c.l.b16 %v469
    %v503 = vunpack.c.l.b16 %v470
    %v504 = vunpack.c.l.b16 %v471
    %v505 = vunpack.c.l.b16 %v472
    %v506 = vunpack.c.l.b16 %v473
    %v507 = vunpack.c.l.b16 %v474
    %v508 = vunpack.c.l.b16 %v475
    %v509 = vunpack.c.l.b16 %v476
    %v510 = vunpack.c.l.b16 %v477
    %v511 = vunpack.c.l.b16 %v478
    %v512 = vunpack.c.l.b16 %v479
    %v513 = vunpack.c.l.b16 %v480
    %v514 = vunpack.c.l.b16 %v481
    %v515 = vunpack.c.l.b16 %v482
    %v516 = vpack.c.b16 %v501, %v500
    %v517 = vpack.c.b16 %v503, %v502
    %v518 = vpack.c.b16 %v505, %v504
    %v519 = vpack.c.b16 %v507, %v506
    %v520 = vpack.c.b16 %v509, %v508
    %v521 = vpack.c.b16 %v511, %v510
    %v522 = vpack.c.b16 %v513, %v512
    %v523 = vpack.c.b16 %v515, %v514
    %532 = vmatpush.bf16.msra.mxu0 %v523
    %533 = vmatpush.bf16.msra.mxu0 %v522
    %534 = vmatpush.bf16.msra.mxu0 %v521
    %535 = vmatpush.bf16.msra.mxu0 %v520
    %536 = vmatpush.bf16.msra.mxu0 %v519
    %537 = vmatpush.bf16.msra.mxu0 %v518
    %538 = vmatpush.bf16.msra.mxu0 %v517
    %539 = vmatpush.bf16.msra.mxu0 %v516
    %540 = vmatmul.bf16.gmra.mxu0 %v465
    %v541 = vpop.f32.mrf.mxu0
    %v542 = vadd.f32 %v483, %v541
    %v543 = vpop.f32.mrf.mxu0
    %544 = vdwg.mxu0
    %545 = vst [vmem:[#allocation2] sm:$0xff] %v542
    // Predicated region
    $region26: #{_gcn_fused_padded.1} parent=1 // pred_check
      _
    $region27: #{_gcn_fused_padded.1} parent=1 // pred_check_branch
      %547 = sbr.rel (0) target = $region29
    $region28: #{_gcn_fused_padded.1} parent=1 // pred_region
      %549 = vsyncadd [#allocation3], 0
      %s551 = sshll.u32 [#allocation2], 4
      %s552 = int_to_ptr.vmem [resolvable:$true] %s551
      %s553 = sshll.u32 %s6, 4
      %s554 = int_to_ptr.hbm [resolvable:$true] %s553
      %556 = dma.vmem_to_hbm [thread:$0]  %s552, 128, %s554, [#allocation3]
    $region29: #{_gcn_fused_padded.1} parent=1 // pred_fallthru
      _
    // Predicated region
    $region30: #{_gcn_fused_padded.1} parent=1 // pred_check
      _
    $region31: #{_gcn_fused_padded.1} parent=1 // pred_check_branch
      %558 = sbr.rel (0) target = $region33
    $region32: #{_gcn_fused_padded.1} parent=1 // pred_region
      %560 = dma.done [#allocation3], 128
    $region33: #{_gcn_fused_padded.1} parent=1 // pred_fallthru
      _
    %561 = vsyncpa [#allocation3], 1

</llo_original>
